<compile_context>
chip_gen: v7x
topology: tpu7x:2x2x1
jax: 0.10.0
libtpu: 0.0.40
codegen_flags: <defaults>
</compile_context>

<pallas_src>
import jax
import jax.numpy as jnp
from jax.experimental import pallas as pl
from jax.experimental.pallas import tpu as pltpu


def _round_up(x, m):
    return ((x + m - 1) // m) * m


def _image_pool_kernel(x_ref, w_ref, bias_ref, o_ref, sum_ref, acc_ref):
    # x_ref:    (1, TC, THW)   f32   input tile (one sample, C_in tile, spatial tile)
    # w_ref:    (TC, C_out)    f32   folded weight tile: conv_w.T * bn_scale / (H*W)
    # bias_ref: (1, C_out)     f32   folded BN bias
    # o_ref:    (1, 1, C_out)  f32   post-ReLU pooled features for this sample
    # sum_ref:  (1, TC)        f32   running spatial sum for the current C_in tile
    # acc_ref:  (1, C_out)     f32   running channel-matmul accumulator
    c = pl.program_id(1)
    k = pl.program_id(2)
    nc = pl.num_programs(1)
    nk = pl.num_programs(2)

    @pl.when(jnp.logical_and(c == 0, k == 0))
    def _():
        acc_ref[...] = jnp.zeros_like(acc_ref)

    @pl.when(k == 0)
    def _():
        sum_ref[...] = jnp.zeros_like(sum_ref)

    # Partial spatial sum of this tile (zero padding contributes nothing).
    sum_ref[...] += jnp.sum(x_ref[...], axis=-1)

    # One small MXU call per C_in tile (not per spatial tile).
    @pl.when(k == nk - 1)
    def _():
        acc_ref[...] += jnp.dot(sum_ref[...], w_ref[...],
                                preferred_element_type=jnp.float32)

    # Finalize: folded BN bias + ReLU, write the tiny pooled vector.
    @pl.when(jnp.logical_and(c == nc - 1, k == nk - 1))
    def _():
        y = jnp.maximum(acc_ref[...] + bias_ref[...], 0.0)     # (1, C_out)
        o_ref[...] = y[:, None, :].astype(o_ref.dtype)


def image_pool_forward(x, conv_w, bn_gamma, bn_beta, bn_mean, bn_var, eps=1e-5):
    """x: (N, C_in, H, W) f32; conv_w: (C_out, C_in, 1, 1). Returns (N, C_out, H, W)."""
    N, C_in, H, W = x.shape
    C_out = conv_w.shape[0]
    HW = H * W

    # --- fold BN(eval) and the mean divisor into weight/bias (one-time glue) ---
    scale = bn_gamma / jnp.sqrt(bn_var + eps)                          # (C_out,)
    bias = (bn_beta - bn_mean * scale).reshape(1, C_out)               # (1, C_out)
    w_folded = conv_w.reshape(C_out, C_in).T * (scale[None, :] / float(HW))  # (C_in, C_out)

    # --- tile sizing: lane-dense spatial tiles, sublane-aligned C_in tiles ---
    MAX_THW = 2048                      # 1 x 512 x 2048 f32 tile = 4 MiB/buffer
    MAX_TC = 512
    hw_pad = _round_up(HW, 128)
    thw = min(hw_pad, MAX_THW)
    hw_pad = _round_up(hw_pad, thw)

    tc = C_in if C_in <= MAX_TC else MAX_TC
    cin_pad = _round_up(C_in, tc)

    x_flat = x.reshape(N, C_in, HW)
    if hw_pad != HW or cin_pad != C_in:
        # Zero padding: padded lanes/channels add 0 to the sums and the
        # true 1/(H*W) divisor is already folded into the weight.
        x_flat = jnp.pad(x_flat, ((0, 0), (0, cin_pad - C_in), (0, hw_pad - HW)))
        w_folded = jnp.pad(w_folded, ((0, cin_pad - C_in), (0, 0)))

    grid = (N, cin_pad // tc, hw_pad // thw)

    y = pl.pallas_call(
        _image_pool_kernel,
        out_shape=jax.ShapeDtypeStruct((N, 1, C_out), jnp.float32),
        grid_spec=pltpu.PrefetchScalarGridSpec(
            num_scalar_prefetch=0,
            grid=grid,
            in_specs=[
                pl.BlockSpec((1, tc, thw), lambda n, c, k: (n, c, k)),
                pl.BlockSpec((tc, C_out), lambda n, c, k: (c, 0)),
                pl.BlockSpec((1, C_out), lambda n, c, k: (0, 0)),
            ],
            out_specs=pl.BlockSpec((1, 1, C_out), lambda n, c, k: (n, 0, 0)),
            scratch_shapes=[
                pltpu.VMEM((1, tc), jnp.float32),
                pltpu.VMEM((1, C_out), jnp.float32),
            ],
        ),
        compiler_params=pltpu.CompilerParams(
            dimension_semantics=("parallel", "arbitrary", "arbitrary"),
            vmem_limit_bytes=64 * 1024 * 1024,
        ),
    )(x_flat, w_folded, bias)

    y = y.reshape(N, C_out)
    # Bilinear upsample of a 1x1 map to (H, W) (align_corners=False) is a pure
    # broadcast; do it outside the kernel so it can fuse into the consumer.
    return jnp.broadcast_to(y[:, :, None, None], (N, C_out, H, W))


def _reference(x, conv_w, bn_gamma, bn_beta, bn_mean, bn_var, eps=1e-5):
    # Pure-JAX reference of the PyTorch forward (BN in eval mode).
    pooled = jnp.mean(x, axis=(2, 3))                                  # (N, C_in)
    y = pooled @ conv_w.reshape(conv_w.shape[0], -1).T                 # (N, C_out)
    y = (y - bn_mean) / jnp.sqrt(bn_var + eps) * bn_gamma + bn_beta
    y = jnp.maximum(y, 0.0)
    H, W = x.shape[2], x.shape[3]
    return jnp.broadcast_to(y[:, :, None, None], (x.shape[0], y.shape[1], H, W))


if __name__ == "__main__":
    key = jax.random.PRNGKey(0)
    N, C_in, C_out, H, W = 2, 4, 8, 16, 16

    k_x, k_w, k_g, k_b, k_m, k_v = jax.random.split(key, 6)
    x = jax.random.normal(k_x, (N, C_in, H, W), dtype=jnp.float32)
    conv_w = jax.random.normal(k_w, (C_out, C_in, 1, 1), dtype=jnp.float32) * 0.1
    bn_gamma = 1.0 + 0.1 * jax.random.normal(k_g, (C_out,), dtype=jnp.float32)
    bn_beta = 0.1 * jax.random.normal(k_b, (C_out,), dtype=jnp.float32)
    bn_mean = 0.05 * jax.random.normal(k_m, (C_out,), dtype=jnp.float32)
    bn_var = jnp.abs(1.0 + 0.1 * jax.random.normal(k_v, (C_out,), dtype=jnp.float32))

    out = image_pool_forward(x, conv_w, bn_gamma, bn_beta, bn_mean, bn_var)
    out = jax.block_until_ready(out)

    ref = _reference(x, conv_w, bn_gamma, bn_beta, bn_mean, bn_var)
    assert out.shape == (N, C_out, H, W)
    assert jnp.allclose(out, ref, atol=1e-5, rtol=1e-5), "mismatch vs reference"

    print("KERNEL_OK")
</pallas_src>

<mosaic_0001>
module attributes {stable_mosaic.version = 11 : i64} {
  func.func @_image_pool_kernel(%arg0: i32, %arg1: i32, %arg2: i32, %arg3: memref<1x4x256xf32, #tpu.memory_space<vmem>>, %arg4: memref<4x8xf32, #tpu.memory_space<vmem>>, %arg5: memref<1x8xf32, #tpu.memory_space<vmem>>, %arg6: memref<1x1x8xf32, #tpu.memory_space<vmem>>, %arg7: memref<1x4xf32, #tpu.memory_space<vmem>>, %arg8: memref<1x8xf32, #tpu.memory_space<vmem>>) attributes {dimension_semantics = [#tpu.dimension_semantics<parallel>, #tpu.dimension_semantics<arbitrary>, #tpu.dimension_semantics<arbitrary>], iteration_bounds = array<i64: 2, 1, 1>, scalar_prefetch = 0 : i64, scratch_operands = 2 : i64, tpu.core_type = #tpu.core_type<tc>, window_params = [{transform_indices = @transform_0, window_bounds = array<i64: 1, 4, 256>}, {transform_indices = @transform_1, window_bounds = array<i64: 4, 8>}, {pipeline_mode = #tpu.pipeline_mode<synchronous>, transform_indices = @transform_2, window_bounds = array<i64: 1, 8>}, {transform_indices = @transform_3, window_bounds = array<i64: 1, 1, 8>}]} {
    %c0_i32 = arith.constant 0 : i32
    %0 = arith.cmpi eq, %arg1, %c0_i32 : i32
    %c0_i32_0 = arith.constant 0 : i32
    %1 = arith.cmpi eq, %arg2, %c0_i32_0 : i32
    %2 = arith.andi %0, %1 : i1
    %3 = arith.extui %2 : i1 to i32
    %c0_i32_1 = arith.constant 0 : i32
    %4 = arith.cmpi ne, %3, %c0_i32_1 : i32
    scf.if %4 {
      %cst_15 = arith.constant 0.000000e+00 : f32
      %21 = vector.broadcast %cst_15 : f32 to vector<1x8xf32>
      %c0_16 = arith.constant 0 : index
      %c0_17 = arith.constant 0 : index
      %22 = vector.load %arg8[%c0_16, %c0_17] : memref<1x8xf32, #tpu.memory_space<vmem>>, vector<1x8xf32>
      tpu.vector_store %arg8[%c0_16, %c0_17], %21 {strides = array<i32>} : memref<1x8xf32, #tpu.memory_space<vmem>>, vector<1x8xf32>,
    } else {
    }
    %c0_i32_2 = arith.constant 0 : i32
    %5 = arith.cmpi eq, %arg2, %c0_i32_2 : i32
    %6 = arith.extui %5 : i1 to i32
    %c0_i32_3 = arith.constant 0 : i32
    %7 = arith.cmpi ne, %6, %c0_i32_3 : i32
    scf.if %7 {
      %cst_15 = arith.constant 0.000000e+00 : f32
      %21 = vector.broadcast %cst_15 : f32 to vector<1x4xf32>
      %c0_16 = arith.constant 0 : index
      %c0_17 = arith.constant 0 : index
      %22 = vector.load %arg7[%c0_16, %c0_17] : memref<1x4xf32, #tpu.memory_space<vmem>>, vector<1x4xf32>
      tpu.vector_store %arg7[%c0_16, %c0_17], %21 {strides = array<i32>} : memref<1x4xf32, #tpu.memory_space<vmem>>, vector<1x4xf32>,
    } else {
    }
    %c0 = arith.constant 0 : index
    %c0_4 = arith.constant 0 : index
    %8 = vector.load %arg7[%c0, %c0_4] : memref<1x4xf32, #tpu.memory_space<vmem>>, vector<1x4xf32>
    %c0_5 = arith.constant 0 : index
    %c0_6 = arith.constant 0 : index
    %c0_7 = arith.constant 0 : index
    %9 = vector.load %arg3[%c0_5, %c0_6, %c0_7] : memref<1x4x256xf32, #tpu.memory_space<vmem>>, vector<1x4x256xf32>
    %cst = arith.constant dense<0.000000e+00> : vector<1x4xf32>
    %10 = vector.multi_reduction <add>, %9, %cst [2] : vector<1x4x256xf32> to vector<1x4xf32>
    %11 = arith.addf %8, %10 : vector<1x4xf32>
    %c0_8 = arith.constant 0 : index
    %c0_9 = arith.constant 0 : index
    %12 = vector.load %arg7[%c0_8, %c0_9] : memref<1x4xf32, #tpu.memory_space<vmem>>, vector<1x4xf32>
    tpu.vector_store %arg7[%c0_8, %c0_9], %11 {strides = array<i32>} : memref<1x4xf32, #tpu.memory_space<vmem>>, vector<1x4xf32>,
    %c0_i32_10 = arith.constant 0 : i32
    %13 = arith.cmpi eq, %arg2, %c0_i32_10 : i32
    %14 = arith.extui %13 : i1 to i32
    %c0_i32_11 = arith.constant 0 : i32
    %15 = arith.cmpi ne, %14, %c0_i32_11 : i32
    scf.if %15 {
      %c0_15 = arith.constant 0 : index
      %c0_16 = arith.constant 0 : index
      %21 = vector.load %arg8[%c0_15, %c0_16] : memref<1x8xf32, #tpu.memory_space<vmem>>, vector<1x8xf32>
      %c0_17 = arith.constant 0 : index
      %c0_18 = arith.constant 0 : index
      %22 = vector.load %arg7[%c0_17, %c0_18] : memref<1x4xf32, #tpu.memory_space<vmem>>, vector<1x4xf32>
      %c0_19 = arith.constant 0 : index
      %c0_20 = arith.constant 0 : index
      %23 = vector.load %arg4[%c0_19, %c0_20] : memref<4x8xf32, #tpu.memory_space<vmem>>, vector<4x8xf32>
      %cst_21 = arith.constant dense<0.000000e+00> : vector<1x8xf32>
      %24 = tpu.matmul %22, %23, %cst_21 {dimension_numbers = #tpu.dot_dimension_numbers<[1], [0], [0], [1], [0, 0, 1, 1], [], []>} : vector<1x4xf32>, vector<4x8xf32>, vector<1x8xf32> -> vector<1x8xf32>
      %25 = arith.addf %21, %24 : vector<1x8xf32>
      %c0_22 = arith.constant 0 : index
      %c0_23 = arith.constant 0 : index
      %26 = vector.load %arg8[%c0_22, %c0_23] : memref<1x8xf32, #tpu.memory_space<vmem>>, vector<1x8xf32>
      tpu.vector_store %arg8[%c0_22, %c0_23], %25 {strides = array<i32>} : memref<1x8xf32, #tpu.memory_space<vmem>>, vector<1x8xf32>,
    } else {
    }
    %c0_i32_12 = arith.constant 0 : i32
    %16 = arith.cmpi eq, %arg1, %c0_i32_12 : i32
    %c0_i32_13 = arith.constant 0 : i32
    %17 = arith.cmpi eq, %arg2, %c0_i32_13 : i32
    %18 = arith.andi %16, %17 : i1
    %19 = arith.extui %18 : i1 to i32
    %c0_i32_14 = arith.constant 0 : i32
    %20 = arith.cmpi ne, %19, %c0_i32_14 : i32
    scf.if %20 {
      %c0_15 = arith.constant 0 : index
      %c0_16 = arith.constant 0 : index
      %21 = vector.load %arg8[%c0_15, %c0_16] : memref<1x8xf32, #tpu.memory_space<vmem>>, vector<1x8xf32>
      %c0_17 = arith.constant 0 : index
      %c0_18 = arith.constant 0 : index
      %22 = vector.load %arg5[%c0_17, %c0_18] : memref<1x8xf32, #tpu.memory_space<vmem>>, vector<1x8xf32>
      %23 = arith.addf %21, %22 : vector<1x8xf32>
      %cst_19 = arith.constant 0.000000e+00 : f32
      %24 = vector.broadcast %cst_19 : f32 to vector<1x8xf32>
      %25 = arith.maximumf %23, %24 : vector<1x8xf32>
      %26 = vector.shape_cast %25 : vector<1x8xf32> to vector<1x1x8xf32>
      %c0_20 = arith.constant 0 : index
      %c0_21 = arith.constant 0 : index
      %c0_22 = arith.constant 0 : index
      %27 = vector.load %arg6[%c0_20, %c0_21, %c0_22] : memref<1x1x8xf32, #tpu.memory_space<vmem>>, vector<1x1x8xf32>
      tpu.vector_store %arg6[%c0_20, %c0_21, %c0_22], %26 {strides = array<i32>} : memref<1x1x8xf32, #tpu.memory_space<vmem>>, vector<1x1x8xf32>,
    } else {
    }
    return
  }
  func.func @transform_0(%arg0: i32, %arg1: i32, %arg2: i32) -> (i32, i32, i32) {
    %c0_i32 = arith.constant 0 : i32
    return %arg0, %arg1, %arg2 : i32, i32, i32
  }
  func.func @transform_1(%arg0: i32, %arg1: i32, %arg2: i32) -> (i32, i32) {
    %c0_i32 = arith.constant 0 : i32
    %c0_i32_0 = arith.constant 0 : i32
    return %arg1, %c0_i32 : i32, i32
  }
  func.func @transform_2(%arg0: i32, %arg1: i32, %arg2: i32) -> (i32, i32) {
    %c0_i32 = arith.constant 0 : i32
    %c0_i32_0 = arith.constant 0 : i32
    %c0_i32_1 = arith.constant 0 : i32
    return %c0_i32, %c0_i32_0 : i32, i32
  }
  func.func @transform_3(%arg0: i32, %arg1: i32, %arg2: i32) -> (i32, i32, i32) {
    %c0_i32 = arith.constant 0 : i32
    %c0_i32_0 = arith.constant 0 : i32
    %c0_i32_1 = arith.constant 0 : i32
    return %arg0, %c0_i32, %c0_i32_0 : i32, i32, i32
  }
}

</mosaic_0001>

<llo_original>
// kernel: tpu_custom_call.1
$region0: #{tpu_custom_call.1}
  #allocation0 [shape = 'u32[]', space=smem, size = 0x4, offset = 0x4, fixed_abs, tag = 'smem constant byte address 0x4 - core index']
  #allocation1 [shape = 'u32[144,128]{1,0:T(1,128)}', space=vmem, size = 0x12000, scoped, tag = 'internal scratch']
  #allocation2 [shape = 'f32[1,4]{1,0:T(1,128)}', space=vmem, size = 0x200, scoped, tag = 'scratch operand']
  #allocation3 [shape = 'f32[1,8]{1,0:T(1,128)}', space=vmem, size = 0x200, scoped, tag = 'scratch operand']
  %s0 = inlined_call_operand.hbm [shape: f32[2,4,256], index: 0, kind: input, shape index: {}]
  %s1 = inlined_call_operand.hbm [shape: f32[4,8], index: 1, kind: input, shape index: {}]
  %s2 = inlined_call_operand.hbm [shape: f32[1,8], index: 2, kind: input, shape index: {}]
  %s3 = inlined_call_operand.hbm [shape: f32[2,1,8], index: 3, kind: output, shape index: {}]
  %s4 = sld [smem:[#allocation0]]
  $region73: #{tpu_custom_call.1} parent=0
    _
  %s6 = ssub.s32 1, %s4
  %s7 = scalar_select 0, %s6, %s4
  $region1: #{tpu_custom_call.1} parent=0
    #allocation4 [shape = 'u8[8192]{0}', space=vmem, size = 0x2000, scoped, tag = 'input window, operand 0']
    #allocation5 [shape = 's32[2]{0}', space=sflag, size = 0x8, scoped, tag = 'scoped memory for tpu_custom_call.1']
    #allocation6 [shape = 's32[2]{0}', space=sflag, size = 0x8, scoped, tag = 'scoped memory for tpu_custom_call.1']
    #allocation7 [shape = 'u8[2048]{0}', space=vmem, size = 0x800, scoped, tag = 'input window, operand 1, single buffered']
    #allocation8 [shape = 's32[1]{0}', space=sflag, size = 0x4, scoped, tag = 'scoped memory for tpu_custom_call.1']
    #allocation9 [shape = 'u8[512]{0}', space=vmem, size = 0x400, scoped, tag = 'input window, operand 2, single buffered']
    #allocation10 [shape = 'u8[1024]{0}', space=vmem, size = 0x400, scoped, tag = 'output window, operand 0']
    %8 = vsyncpa [#allocation5], 0
    %s9 = scalar_lea.sflag [#allocation5], 1
    %10 = vsyncpa %s9, 0
    %11 = vsyncpa [#allocation8], 0
    %12 = vsyncpa [#allocation6], 0
    %s13 = scalar_lea.sflag [#allocation6], 1
    %14 = vsyncpa %s13, 0
    loop: start=0, step=1, limit=4
    $region2: #{tpu_custom_call.1} parent=1 // loop_pre_header
      _
    $region3: #{tpu_custom_call.1} parent=1 // loop_header
      %s16 = sphi 0, %s20
      %p17 = scmp.ge.s32.totalorder %s16, 4
      %s23 = sphi 0, %s42
      %s24 = sphi 0, %s38
      %s25 = sphi 0, %s34
      %s26 = sphi 0, %s23
      %s27 = sphi 0, %s24
      %s28 = sphi 0, %s25
      %s29 = sphi 0, %s26
      %s30 = sphi 0, %s27
      %s31 = sphi 0, %s28
      %s49 = sphi 0, %s51
      %s52 = sphi 0, %s49
      %s53 = sphi 0, %s52
      %s69 = sphi 0, %s53
      %s75 = sphi 0, %s77
      %s78 = sphi 0, %s75
      %s79 = sphi 0, %s78
      %s95 = sphi 0, %s79
      %s99 = sphi 0, %s99
      %s101 = sphi 0, %s99
      %s102 = sphi 0, %s101
      %s116 = sphi 0, %s102
      %s122 = sphi 0, %s124
      %s125 = sphi 0, %s122
      %s126 = sphi 0, %s125
      %s142 = sphi 0, %s126
    $region4: #{tpu_custom_call.1} parent=1 // loop_header_branch
      %19 = sbr.rel (%p17) target = $region8
    $region5: #{tpu_custom_call.1} parent=1 // loop_body
      %s21 = ssub.s32 %s16, 1
      %s22 = ssub.s32 %s16, 2
      %s32 = sadd.s32 1, %s25
      %p33 = scmp.ge.s32.totalorder %s32, 1
      %s34 = scalar_select %p33, 0, %s32
      %s35 = sadd.s32 1, %s24
      %s36 = scalar_select %p33, %s35, %s24
      %p37 = scmp.ge.s32.totalorder %s36, 1
      %s38 = scalar_select %p37, 0, %s36
      %s39 = sadd.s32 1, %s23
      %s40 = scalar_select %p37, %s39, %s23
      %p41 = scmp.ge.s32.totalorder %s40, 2
      %s42 = scalar_select %p41, 0, %s40
      %s43 = ssub.s32 %s23, %s42
      %s44 = ssub.s32 %s24, %s38
      %s45 = sor.u32 %s43, %s44
      %s46 = ssub.s32 %s25, %s34
      %s47 = sor.u32 %s45, %s46
      %p48 = scmp.eq.s32.totalorder %s47, 0
      %s50 = sadd.s32 %s49, 1
      %s51 = scalar_select %p48, %s49, %s50
      %p54 = pneg %p48
      %p55 = scmp.eq.s32.totalorder %s16, 1
      %p56 = por %p54, %p55
      %p57 = scmp.ne.s32.totalorder %s49, %s52
      %p58 = scmp.eq.s32.totalorder %s16, 0
      %p59 = por %p57, %p58
      %p60 = scmp.ne.s32.totalorder %s49, %s52
      %p61 = scmp.eq.s32.totalorder %s21, 1
      %p62 = por %p60, %p61
      %p63 = scmp.ne.s32.totalorder %s52, %s53
      %p64 = scmp.eq.s32.totalorder %s21, 0
      %p65 = por %p63, %p64
      %p66 = scmp.ne.s32.totalorder %s52, %s53
      %p67 = scmp.eq.s32.totalorder %s22, 1
      %p68 = por %p66, %p67
      %p70 = scmp.ne.s32.totalorder %s53, %s69
      %p71 = scmp.eq.s32.totalorder %s22, 0
      %p72 = por %p70, %p71
      %s73 = ssub.s32 %s24, %s38
      %p74 = scmp.eq.s32.totalorder %s73, 0
      %s76 = sadd.s32 %s75, 1
      %s77 = scalar_select %p74, %s75, %s76
      %p80 = pneg %p74
      %p81 = scmp.eq.s32.totalorder %s16, 1
      %p82 = por %p80, %p81
      %p83 = scmp.ne.s32.totalorder %s75, %s78
      %p84 = scmp.eq.s32.totalorder %s16, 0
      %p85 = por %p83, %p84
      %p86 = scmp.ne.s32.totalorder %s75, %s78
      %p87 = scmp.eq.s32.totalorder %s21, 1
      %p88 = por %p86, %p87
      %p89 = scmp.ne.s32.totalorder %s78, %s79
      %p90 = scmp.eq.s32.totalorder %s21, 0
      %p91 = por %p89, %p90
      %p92 = scmp.ne.s32.totalorder %s78, %s79
      %p93 = scmp.eq.s32.totalorder %s22, 1
      %p94 = por %p92, %p93
      %p96 = scmp.ne.s32.totalorder %s79, %s95
      %p97 = scmp.eq.s32.totalorder %s22, 0
      %p98 = por %p96, %p97
      %s100 = sadd.s32 %s99, 1
      %p103 = scmp.eq.s32.totalorder %s16, 1
      %p104 = scmp.ne.s32.totalorder %s99, %s101
      %p105 = scmp.eq.s32.totalorder %s16, 0
      %p106 = por %p104, %p105
      %p107 = scmp.ne.s32.totalorder %s99, %s101
      %p108 = scmp.eq.s32.totalorder %s21, 1
      %p109 = por %p107, %p108
      %p110 = scmp.ne.s32.totalorder %s101, %s102
      %p111 = scmp.eq.s32.totalorder %s21, 0
      %p112 = por %p110, %p111
      %p113 = scmp.ne.s32.totalorder %s101, %s102
      %p114 = scmp.eq.s32.totalorder %s22, 1
      %p115 = por %p113, %p114
      %p117 = scmp.ne.s32.totalorder %s102, %s116
      %p118 = scmp.eq.s32.totalorder %s22, 0
      %p119 = por %p117, %p118
      %s120 = ssub.s32 %s23, %s42
      %p121 = scmp.eq.s32.totalorder %s120, 0
      %s123 = sadd.s32 %s122, 1
      %s124 = scalar_select %p121, %s122, %s123
      %p127 = pneg %p121
      %p128 = scmp.eq.s32.totalorder %s16, 1
      %p129 = por %p127, %p128
      %p130 = scmp.ne.s32.totalorder %s122, %s125
      %p131 = scmp.eq.s32.totalorder %s16, 0
      %p132 = por %p130, %p131
      %p133 = scmp.ne.s32.totalorder %s122, %s125
      %p134 = scmp.eq.s32.totalorder %s21, 1
      %p135 = por %p133, %p134
      %p136 = scmp.ne.s32.totalorder %s125, %s126
      %p137 = scmp.eq.s32.totalorder %s21, 0
      %p138 = por %p136, %p137
      %p139 = scmp.ne.s32.totalorder %s125, %s126
      %p140 = scmp.eq.s32.totalorder %s22, 1
      %p141 = por %p139, %p140
      %p143 = scmp.ne.s32.totalorder %s126, %s142
      %p144 = scmp.eq.s32.totalorder %s22, 0
      %p145 = por %p143, %p144
      %p146 = scmp.le.s32.totalorder 1, %s16
      %p147 = scmp.lt.s32.totalorder %s16, 3
      %p148 = pnand %p146, %p147
      %p149 = pneg %p148
      // Predicated region
      $region9: #{tpu_custom_call.1} parent=5 // pred_check
        _
      $region10: #{tpu_custom_call.1} parent=5 // pred_check_branch
        %151 = sbr.rel (%p148) target = $region12
      $region11: #{tpu_custom_call.1} parent=5 // pred_region
        %s152 = ssub.s32 %s16, 1
        // Predicated region
        $region13: #{tpu_custom_call.1} parent=11 // pred_check
          %p153 = pneg %p91
        $region14: #{tpu_custom_call.1} parent=11 // pred_check_branch
          %155 = sbr.rel (%p153) target = $region16
        $region15: #{tpu_custom_call.1} parent=11 // pred_region
          %s157 = ssub.s32 64, 64
          %158 = vsyncadd [#allocation8], %s157
          %s159 = smul.addr %s27, 64
          %s160 = scalar_lea.hbm %s1, %s159
          %s162 = sshll.u32 [#allocation7], 4
          %s163 = int_to_ptr.vmem [resolvable:$true] %s162
          %165 = dma.hbm_to_vmem [thread:$0]  %s160, 64, %s163, [#allocation8]
        $region16: #{tpu_custom_call.1} parent=11 // pred_fallthru
          _
        // Predicated region
        $region17: #{tpu_custom_call.1} parent=11 // pred_check
          %p166 = pneg %p112
        $region18: #{tpu_custom_call.1} parent=11 // pred_check_branch
          %168 = sbr.rel (%p166) target = $region20
        $region19: #{tpu_custom_call.1} parent=11 // pred_region
          %s170 = ssub.s32 16, 16
          %171 = vsyncadd [#allocation8], %s170
          %s173 = sshll.u32 [#allocation9], 4
          %s174 = int_to_ptr.vmem [resolvable:$true] %s173
          %176 = dma.hbm_to_vmem [thread:$0]  %s2, 16, %s174, [#allocation8]
        $region20: #{tpu_custom_call.1} parent=11 // pred_fallthru
          _
      $region12: #{tpu_custom_call.1} parent=5 // pred_fallthru
        _
      %p177 = scmp.lt.s32.totalorder %s16, 2
      // Predicated region
      $region21: #{tpu_custom_call.1} parent=5 // pred_check
        %p178 = pneg %p177
      $region22: #{tpu_custom_call.1} parent=5 // pred_check_branch
        %180 = sbr.rel (%p178) target = $region24
      $region23: #{tpu_custom_call.1} parent=5 // pred_region
        // Predicated region
        $region25: #{tpu_custom_call.1} parent=23 // pred_check
          %p181 = pneg %p59
        $region26: #{tpu_custom_call.1} parent=23 // pred_check_branch
          %183 = sbr.rel (%p181) target = $region28
        $region27: #{tpu_custom_call.1} parent=23 // pred_region
          %s184 = sand.u32 %s49, 1
          %s185 = scalar_lea.sflag [#allocation5], %s184
          %s186 = sand.u32 %s49, 1
          %s187 = smul.addr %s186, 8
          %s188 = scalar_lea.vmem [#allocation4], %s187
          %s189 = smul.u32 2, %s25
          %s191 = ssub.s32 128, 128
          %192 = vsyncadd %s185, %s191
          %s193 = smul.addr %s24, 2
          %s194 = sadd.s32 %s189, %s193
          %s195 = smul.addr %s23, 2
          %s196 = sadd.s32 %s194, %s195
          %s197 = smul.addr %s196, 64
          %s198 = scalar_lea.hbm %s0, %s197
          %s200 = sshll.u32 %s188, 4
          %s201 = int_to_ptr.vmem [resolvable:$true] %s200
          %203 = dma.hbm_to_vmem [thread:$0]  %s198, 128, %s201, %s185
        $region28: #{tpu_custom_call.1} parent=23 // pred_fallthru
          _
      $region24: #{tpu_custom_call.1} parent=5 // pred_fallthru
        _
      %p204 = scmp.le.s32.totalorder 1, %s16
      %p205 = scmp.lt.s32.totalorder %s16, 3
      %p206 = pnand %p204, %p205
      %p207 = pneg %p206
      // Predicated region
      $region29: #{tpu_custom_call.1} parent=5 // pred_check
        _
      $region30: #{tpu_custom_call.1} parent=5 // pred_check_branch
        %209 = sbr.rel (%p206) target = $region32
      $region31: #{tpu_custom_call.1} parent=5 // pred_region
        %s210 = ssub.s32 %s16, 1
        %s211 = sand.u32 %s52, 1
        %s212 = scalar_lea.sflag [#allocation5], %s211
        %s213 = sand.u32 %s52, 1
        %s214 = smul.addr %s213, 8
        %s215 = scalar_lea.vmem [#allocation4], %s214
        // Predicated region
        $region33: #{tpu_custom_call.1} parent=31 // pred_check
          %p216 = pneg %p65
        $region34: #{tpu_custom_call.1} parent=31 // pred_check_branch
          %218 = sbr.rel (%p216) target = $region36
        $region35: #{tpu_custom_call.1} parent=31 // pred_region
          %219 = dma.done %s212, 128
        $region36: #{tpu_custom_call.1} parent=31 // pred_fallthru
          _
        // Predicated region
        $region37: #{tpu_custom_call.1} parent=31 // pred_check
          %p220 = pneg %p91
        $region38: #{tpu_custom_call.1} parent=31 // pred_check_branch
          %222 = sbr.rel (%p220) target = $region40
        $region39: #{tpu_custom_call.1} parent=31 // pred_region
          %223 = dma.done [#allocation8], 64
        $region40: #{tpu_custom_call.1} parent=31 // pred_fallthru
          _
        // Predicated region
        $region41: #{tpu_custom_call.1} parent=31 // pred_check
          %p224 = pneg %p112
        $region42: #{tpu_custom_call.1} parent=31 // pred_check_branch
          %226 = sbr.rel (%p224) target = $region44
        $region43: #{tpu_custom_call.1} parent=31 // pred_region
          %227 = dma.done [#allocation8], 16
        $region44: #{tpu_custom_call.1} parent=31 // pred_fallthru
          _
        %s228 = sand.u32 %s52, 1
        %s229 = scalar_lea.sflag [#allocation5], %s228
        %s230 = sand.u32 %s52, 1
        %s231 = smul.addr %s230, 8
        %s232 = scalar_lea.vmem [#allocation4], %s231
        %p233 = pneg %p65
        %p234 = pneg %p62
        %p235 = pneg %p91
        %p236 = pneg %p88
        %p237 = pneg %p112
        %p238 = pneg %p109
        %p239 = pneg %p138
        %p240 = pneg %p135
        %s241 = sand.u32 %s125, 1
        %s242 = scalar_lea.sflag [#allocation6], %s241
        %s243 = sand.u32 %s125, 1
        %s244 = scalar_lea.vmem [#allocation10], %s243
        %s245 = smul.u32 2, %s28
        %p246 = scmp.eq.s32.totalorder %s27, 0
        %p247 = scmp.eq.s32.totalorder %s28, 0
        %p248 = pnand %p246, %p247
        %p249 = pneg %p248
        // Predicated region
        $region45: #{tpu_custom_call.1} parent=31 // pred_check
          _
        $region46: #{tpu_custom_call.1} parent=31 // pred_check_branch
          %251 = sbr.rel (%p248) target = $region48
        $region47: #{tpu_custom_call.1} parent=31 // pred_region
          %vm252 = vcmask 57344
          %253 = vst.msk [vmem:[#allocation3] sm:$0x1] %vm252, 0.0
        $region48: #{tpu_custom_call.1} parent=31 // pred_fallthru
          _
        // Predicated region
        $region49: #{tpu_custom_call.1} parent=31 // pred_check
          %p254 = pneg %p247
        $region50: #{tpu_custom_call.1} parent=31 // pred_check_branch
          %256 = sbr.rel (%p254) target = $region52
        $region51: #{tpu_custom_call.1} parent=31 // pred_region
          %vm257 = vcmask 24576
          %258 = vst.msk [vmem:[#allocation2] sm:$0x1] %vm257, 0.0
        $region52: #{tpu_custom_call.1} parent=31 // pred_fallthru
          _
        %v259 = vld [vmem:[#allocation2] sm:$0x1]
        %v260 = vld [vmem:[%s215] sm:$0xff]
        %v262 = vcombine.high %v260, %v260
        %vm264 = vcmask 1043456
        %v265 = vsel %vm264, %v260, 0.0
        %v266 = vsel %vm264, %v262, 0.0
        %v267 = vadd.f32 %v265, %v266
        %268 = vadd.xlane.f32.xlu0 %v267
        %v269 = vpop.xlane.xlu0 %268
        %v271 = vlaneseq
        %v272 = vshrl.u32 %v271, 7
        %v273 = vsub.s32 0, %v272
        %v274 = vrot.slane %v269, %v273
        %v275 = vlaneseq
        %v276 = vshrl.u32 %v275, 7
        %v277 = vsub.s32 1, %v276
        %v278 = vrot.slane %v269, %v277
        %v279 = vlaneseq
        %v280 = vshrl.u32 %v279, 7
        %v281 = vsub.s32 2, %v280
        %v282 = vrot.slane %v269, %v281
        %v283 = vlaneseq
        %v284 = vshrl.u32 %v283, 7
        %v285 = vsub.s32 3, %v284
        %v286 = vrot.slane %v269, %v285
        %v287 = vcombine.low %v274, %v278
        %v288 = vcombine.low %v282, %v286
        %v290 = vunpack.c.l.s4 1966171168
        %v291 = vunpack.c.0.s8 %v290
        %v292 = vlaneseq
        %v293 = vshrl.u32 %v292, 7
        %v294 = vsub.s32 %v291, %v293
        %v295 = vrot.slane %v287, %v294
        %v297 = vunpack.c.l.s4 1966171168
        %v298 = vunpack.c.0.s8 %v297
        %v299 = vlaneseq
        %v300 = vshrl.u32 %v299, 7
        %v301 = vsub.s32 %v298, %v300
        %v302 = vrot.slane %v288, %v301
        %v303 = vcombine.low %v295, %v302
        %v305 = vunpack.c.l.s4 1966171168
        %v306 = vunpack.c.0.s8 %v305
        %v307 = vlaneseq
        %v308 = vshrl.u32 %v307, 7
        %v309 = vsub.s32 %v306, %v308
        %v310 = vrot.slane %v303, %v309
        %311 = vset.pattern.permute.xlu0 0
        %312 = vperm.xlu0 %311, %v310
        %v313 = vpop.permute.xlu0 %312
        %v314 = vlaneseq
        %v315 = vand.u32 %v314, 127
        %v316 = vlaneseq
        %v317 = vshrl.u32 %v316, 7
        %v318 = vsub.s32 %v315, %v317
        %v319 = vrot.slane %v313, %v318
        %v321 = vunpack.c.l.s4 1966171168
        %v322 = vunpack.c.0.s8 %v321
        %v323 = vlaneseq
        %v324 = vshrl.u32 %v323, 7
        %v325 = vsub.s32 %v322, %v324
        %v326 = vrot.slane %v319, %v325
        %v328 = vunpack.c.l.s4 1966171168
        %v329 = vunpack.c.0.s8 %v328
        %v330 = vlaneseq
        %v331 = vshrl.u32 %v330, 7
        %v332 = vsub.s32 %v329, %v331
        %v333 = vrot.slane %v326, %v332
        %v335 = vadd.f32 %v259, %v333
        %vm336 = vcmask 24576
        %337 = vst.msk [vmem:[#allocation2] sm:$0x1] %vm336, %v335
        // Predicated region
        $region53: #{tpu_custom_call.1} parent=31 // pred_check
          %p338 = pneg %p247
        $region54: #{tpu_custom_call.1} parent=31 // pred_check_branch
          %340 = sbr.rel (%p338) target = $region56
        $region55: #{tpu_custom_call.1} parent=31 // pred_region
          %v341 = vld [vmem:[#allocation3] sm:$0x1]
          %v342 = vld [vmem:[#allocation2] sm:$0x1]
          %v343 = vld [vmem:[#allocation7] sm:$0xf]
          %vm344 = vcmask 31744
          %v346 = vsel %vm344, %v342, 0
          %v349 = vsel %vm264, %v343, 0
          %351 = vmatprep.subr.mxu0 0.0
          %352 = vmatpush1.msra.mxu0 %v349
          %353 = vmatprep.subr.mxu0 0.0
          %354 = vmatpush1.msra.mxu0 0.0
          %355 = vmatprep.subr.mxu0 0.0
          %356 = vmatpush1.msra.mxu0 0.0
          %357 = vmatprep.subr.mxu0 0.0
          %358 = vmatpush1.msra.mxu0 0.0
          %359 = vmatprep.subr.mxu0 0.0
          %360 = vmatpush1.msra.mxu0 0.0
          %361 = vmatprep.subr.mxu0 0.0
          %362 = vmatpush1.msra.mxu0 0.0
          %363 = vmatprep.subr.mxu0 0.0
          %364 = vmatpush1.msra.mxu0 0.0
          %365 = vmatprep.subr.mxu0 0.0
          %366 = vmatpush1.msra.mxu0 0.0
          %367 = vmatprep.subr.mxu0 0.0
          %368 = vmatpush1.msra.mxu0 0.0
          %369 = vmatprep.subr.mxu0 0.0
          %370 = vmatpush1.msra.mxu0 0.0
          %371 = vmatprep.subr.mxu0 0.0
          %372 = vmatpush1.msra.mxu0 0.0
          %373 = vmatprep.subr.mxu0 0.0
          %374 = vmatpush1.msra.mxu0 0.0
          %375 = vmatprep.subr.mxu0 0.0
          %376 = vmatpush1.msra.mxu0 0.0
          %377 = vmatprep.subr.mxu0 0.0
          %378 = vmatpush1.msra.mxu0 0.0
          %379 = vmatprep.subr.mxu0 0.0
          %380 = vmatpush1.msra.mxu0 0.0
          %381 = vmatprep.subr.mxu0 0.0
          %382 = vmatpush1.msra.mxu0 0.0
          %383 = vmatprep.subr.mxu0 0.0
          %384 = vmatpush1.msra.mxu0 0.0
          %385 = vmatprep.subr.mxu0 0.0
          %386 = vmatpush1.msra.mxu0 0.0
          %387 = vmatprep.subr.mxu0 0.0
          %388 = vmatpush1.msra.mxu0 0.0
          %389 = vmatprep.subr.mxu0 0.0
          %390 = vmatpush1.msra.mxu0 0.0
          %391 = vmatprep.subr.mxu0 0.0
          %392 = vmatpush1.msra.mxu0 0.0
          %393 = vmatprep.subr.mxu0 0.0
          %394 = vmatpush1.msra.mxu0 0.0
          %395 = vmatprep.subr.mxu0 0.0
          %396 = vmatpush1.msra.mxu0 0.0
          %397 = vmatprep.subr.mxu0 0.0
          %398 = vmatpush1.msra.mxu0 0.0
          %399 = vmatprep.subr.mxu0 0.0
          %400 = vmatpush1.msra.mxu0 0.0
          %401 = vmatprep.subr.mxu0 0.0
          %402 = vmatpush1.msra.mxu0 0.0
          %403 = vmatprep.subr.mxu0 0.0
          %404 = vmatpush1.msra.mxu0 0.0
          %405 = vmatprep.subr.mxu0 0.0
          %406 = vmatpush1.msra.mxu0 0.0
          %407 = vmatprep.subr.mxu0 0.0
          %408 = vmatpush1.msra.mxu0 0.0
          %409 = vmatprep.subr.mxu0 0.0
          %410 = vmatpush1.msra.mxu0 0.0
          %411 = vmatprep.subr.mxu0 0.0
          %412 = vmatpush1.msra.mxu0 0.0
          %413 = vmatprep.subr.mxu0 0.0
          %414 = vmatpush1.msra.mxu0 0.0
          %415 = vmatprep.mubr.f32.mxu0 0.0
          %416 = vmatmul.mubr.f32.gmra.mrb[0].mxu0 %v346
          %v417 = vpop.f32.mrb[0].mxu0
          %v418 = vadd.f32 0.0, %v417
          %v419 = vpop.f32.mrb[0].mxu0
          %420 = vdwg.mxu0
          %v421 = vadd.f32 %v341, %v418
          %vm422 = vcmask 57344
          %423 = vst.msk [vmem:[#allocation3] sm:$0x1] %vm422, %v421
        $region56: #{tpu_custom_call.1} parent=31 // pred_fallthru
          _
        // Predicated region
        $region57: #{tpu_custom_call.1} parent=31 // pred_check
          _
        $region58: #{tpu_custom_call.1} parent=31 // pred_check_branch
          %425 = sbr.rel (%p248) target = $region60
        $region59: #{tpu_custom_call.1} parent=31 // pred_region
          %v426 = vld [vmem:[#allocation3] sm:$0x1]
          %v427 = vld [vmem:[#allocation9] sm:$0x1]
          %v428 = vadd.f32 %v426, %v427
          %v429 = vmax.f32 %v428, 0.0
          %vm430 = vcmask 57344
          %431 = vst.msk [vmem:[%s244] sm:$0x1] %vm430, %v429
        $region60: #{tpu_custom_call.1} parent=31 // pred_fallthru
          _
        %s432 = sand.u32 %s125, 1
        %s433 = scalar_lea.sflag [#allocation6], %s432
        %s434 = sand.u32 %s125, 1
        %s435 = scalar_lea.vmem [#allocation10], %s434
        // Predicated region
        $region61: #{tpu_custom_call.1} parent=31 // pred_check
          %p436 = pneg %p135
        $region62: #{tpu_custom_call.1} parent=31 // pred_check_branch
          %438 = sbr.rel (%p436) target = $region64
        $region63: #{tpu_custom_call.1} parent=31 // pred_region
          %s440 = ssub.s32 16, 16
          %441 = vsyncadd %s433, %s440
          %s442 = smul.addr %s26, 16
          %s443 = scalar_lea.hbm %s3, %s442
          %s445 = sshll.u32 %s435, 4
          %s446 = int_to_ptr.vmem [resolvable:$true] %s445
          %448 = dma.vmem_to_hbm [thread:$0]  %s446, 16, %s443, %s433
        $region64: #{tpu_custom_call.1} parent=31 // pred_fallthru
          _
      $region32: #{tpu_custom_call.1} parent=5 // pred_fallthru
        _
      %p449 = scmp.le.s32.totalorder 2, %s16
      // Predicated region
      $region65: #{tpu_custom_call.1} parent=5 // pred_check
        %p450 = pneg %p449
      $region66: #{tpu_custom_call.1} parent=5 // pred_check_branch
        %452 = sbr.rel (%p450) target = $region68
      $region67: #{tpu_custom_call.1} parent=5 // pred_region
        %s453 = ssub.s32 %s16, 2
        // Predicated region
        $region69: #{tpu_custom_call.1} parent=67 // pred_check
          %p454 = pneg %p141
        $region70: #{tpu_custom_call.1} parent=67 // pred_check_branch
          %456 = sbr.rel (%p454) target = $region72
        $region71: #{tpu_custom_call.1} parent=67 // pred_region
          %s457 = sand.u32 %s126, 1
          %s458 = scalar_lea.sflag [#allocation6], %s457
          %s459 = sand.u32 %s126, 1
          %s460 = scalar_lea.vmem [#allocation10], %s459
          %461 = dma.done %s458, 16
        $region72: #{tpu_custom_call.1} parent=67 // pred_fallthru
          _
      $region68: #{tpu_custom_call.1} parent=5 // pred_fallthru
        _
    $region6: #{tpu_custom_call.1} parent=1 // loop_footer
      %s20 = sadd.s32 1, %s16
    $region7: #{tpu_custom_call.1} parent=1 // loop_footer_branch
      %15 = sbr.rel target = $region3
    $region8: #{tpu_custom_call.1} parent=1 // loop_exit
      _
    %462 = vsyncpa [#allocation5], 1
    %s463 = scalar_lea.sflag [#allocation5], 1
    %464 = vsyncpa %s463, 1
    %465 = vsyncpa [#allocation8], 1
    %466 = vsyncpa [#allocation6], 1
    %s467 = scalar_lea.sflag [#allocation6], 1
    %468 = vsyncpa %s467, 1

</llo_original>
